<compile_context>
chip_gen: v5e
topology: v5e:2x2
jax: 0.10.0
libtpu: 0.0.40
codegen_flags: <defaults>
</compile_context>

<pallas_src>
import functools

import jax
import jax.numpy as jnp
import numpy as np
from jax import lax
from jax.experimental import pallas as pl
from jax.experimental.pallas import tpu as pltpu

EPS = 1e-3


# ---------------------------------------------------------------------------
# VMEM budgeting
# ---------------------------------------------------------------------------
def _vmem_limit_bytes():
    """Scoped-VMEM budget to request: ~3/4 of physical VMEM, capped at 112 MiB."""
    cap = None
    try:
        cap = getattr(pltpu.get_tpu_info(), "vmem_capacity_bytes", None)
    except Exception:
        cap = None
    if not cap:
        try:
            kind = jax.devices()[0].device_kind.lower()
        except Exception:
            kind = ""
        if "7" in kind:
            cap = 64 * 1024 * 1024          # v7x: 64 MiB physical per TensorCore
        elif kind.startswith("tpu"):
            cap = 128 * 1024 * 1024         # v4 / v5e / v5p / v6e
        else:
            cap = 64 * 1024 * 1024          # unknown backend: stay conservative
    return int(min(cap * 3 // 4, 112 * 1024 * 1024))


# ---------------------------------------------------------------------------
# Kernels
# ---------------------------------------------------------------------------
def _fused_kernel(x_ref, gamma_ref, beta_ref, o_ref, *, inv_n):
    # x_ref / o_ref: (N, tc, L)   gamma/beta: (tc, 1)
    x = x_ref[...].astype(jnp.float32)
    # Reduce over N first (cheap VPU adds), then ONE cross-lane (XLU) reduce.
    xs = jnp.sum(x, axis=0)                                    # (tc, L)  VPU
    xsq = jnp.sum(x * x, axis=0)                                # (tc, L)  VPU
    s = jnp.sum(xs, axis=-1, keepdims=True)                     # (tc, 1)  XLU
    sq = jnp.sum(xsq, axis=-1, keepdims=True)                   # (tc, 1)  XLU
    mean = s * inv_n
    var = jnp.maximum(sq * inv_n - mean * mean, 0.0)             # biased var (PyTorch BN)
    scale = lax.rsqrt(var + EPS) * gamma_ref[...].astype(jnp.float32)
    shift = beta_ref[...].astype(jnp.float32) - mean * scale
    y = x * scale[None, :, :] + shift[None, :, :]
    o_ref[...] = jnp.maximum(y, 0.0).astype(o_ref.dtype)


def _stats_kernel(x_ref, gamma_ref, beta_ref, scale_ref, shift_ref,
                  sum_acc, sq_acc, *, inv_n):
    # grid = (C//tc, n_n, n_l); axes 1, 2 are reduction ("arbitrary") axes.
    n = pl.program_id(1)
    l = pl.program_id(2)
    is_first = jnp.logical_and(n == 0, l == 0)
    is_last = jnp.logical_and(n == pl.num_programs(1) - 1,
                              l == pl.num_programs(2) - 1)

    @pl.when(is_first)
    def _():
        sum_acc[...] = jnp.zeros_like(sum_acc)
        sq_acc[...] = jnp.zeros_like(sq_acc)

    x = x_ref[...].astype(jnp.float32)                           # (tn, tc, lt)
    xs = jnp.sum(x, axis=0)                                      # (tc, lt)  VPU
    xsq = jnp.sum(x * x, axis=0)                                  # (tc, lt)  VPU
    sum_acc[...] += jnp.sum(xs, axis=-1, keepdims=True)           # (tc, 1)   XLU
    sq_acc[...] += jnp.sum(xsq, axis=-1, keepdims=True)           # (tc, 1)   XLU

    @pl.when(is_last)
    def _():
        mean = sum_acc[...] * inv_n
        var = jnp.maximum(sq_acc[...] * inv_n - mean * mean, 0.0)
        scale = lax.rsqrt(var + EPS) * gamma_ref[...].astype(jnp.float32)
        shift = beta_ref[...].astype(jnp.float32) - mean * scale
        scale_ref[...] = scale
        shift_ref[...] = shift


def _norm_kernel(x_ref, scale_ref, shift_ref, o_ref):
    # x_ref/o_ref: (tn, tc, lt)   scale/shift: (tc, 1)
    x = x_ref[...].astype(jnp.float32)
    y = x * scale_ref[...][None, :, :] + shift_ref[...][None, :, :]
    o_ref[...] = jnp.maximum(y, 0.0).astype(o_ref.dtype)


# ---------------------------------------------------------------------------
# Tiling helpers
# ---------------------------------------------------------------------------
def _pick_tc(C, fused_fits):
    """Largest channel tile giving >=4 grid steps (>=2/core on dual-TC chips)
    whose fused block fits VMEM; relax the step requirement, then fit, then
    fall back to the smallest tile (max steps, smallest two-pass blocks)."""
    cands = [t for t in (32, 16, 8) if C % t == 0]
    if not cands:
        return C
    for min_steps in (4, 2, 1):
        for t in cands:                       # largest first
            if C // t >= min_steps and fused_fits(t):
                return t
    return cands[-1]


def _pick_l_tile(L, lane_budget):
    """Pick an L tile: returns (l_tile, L_padded); L_padded > L => caller pads."""
    lt_max = max(128, (lane_budget // 128) * 128)
    if L <= lt_max:
        return L, L
    # Largest multiple-of-128 divisor of L that fits the budget (wide lane-dense
    # blocks -> long DMA runs, fewer grid steps).
    for k in range(lt_max // 128, 0, -1):
        cand = 128 * k
        if L % cand == 0:
            return cand, L
    # No multiple-of-128 divisor: zero-pad L (last resort; the pad costs an extra
    # HBM pass).  TODO(synk): in-kernel tail masking would avoid the pad/slice copy.
    lt = min(lt_max, 2048)
    return lt, ((L + lt - 1) // lt) * lt


# ---------------------------------------------------------------------------
# Wrapper
# ---------------------------------------------------------------------------
def batchnorm_relu(x_nchw, gamma, beta, *, tc=None, l_tile=None):
    N, C, H, W = x_nchw.shape
    L = H * W
    raw_bytes = jnp.dtype(x_nchw.dtype).itemsize

    vmem_limit = _vmem_limit_bytes()
    usable = (vmem_limit * 85) // 100          # headroom for Mosaic internals

    x3 = x_nchw.reshape(N, C, L)               # free reshape, no HBM transpose
    gamma2 = gamma.reshape(C, 1).astype(jnp.float32)
    beta2 = beta.reshape(C, 1).astype(jnp.float32)
    inv_n = 1.0 / float(N * L)

    def fused_fits(tc_):
        blk = N * tc_ * L
        # 2 in + 2 out double-buffered raw blocks + ~3 live f32 temporaries.
        return 4 * blk * raw_bytes + 3 * blk * 4 <= usable

    if tc is None:
        tc = _pick_tc(C, fused_fits)
    assert C % tc == 0, (C, tc)

    if l_tile is None and fused_fits(tc):
        # Single fused pass: exactly 1 HBM read + 1 HBM write of x.
        out3 = pl.pallas_call(
            functools.partial(_fused_kernel, inv_n=inv_n),
            out_shape=jax.ShapeDtypeStruct((N, C, L), x_nchw.dtype),
            grid_spec=pltpu.PrefetchScalarGridSpec(
                num_scalar_prefetch=0,
                grid=(C // tc,),
                in_specs=[
                    pl.BlockSpec((N, tc, L), lambda i: (0, i, 0)),
                    pl.BlockSpec((tc, 1), lambda i: (i, 0)),
                    pl.BlockSpec((tc, 1), lambda i: (i, 0)),
                ],
                out_specs=pl.BlockSpec((N, tc, L), lambda i: (0, i, 0)),
            ),
            compiler_params=pltpu.CompilerParams(
                dimension_semantics=("parallel",),
                vmem_limit_bytes=vmem_limit),
        )(x3, gamma2, beta2)
        return out3.reshape(N, C, H, W)

    # ----------------------- two-pass path -----------------------
    # Per-element VMEM bound: 2 in + 2 out double-buffered raw blocks plus ~2
    # live f32 temporaries in the normalize pass.
    elems_budget = max(usable // (4 * raw_bytes + 8), tc * 128)

    if l_tile is not None:
        lt = int(l_tile)
        assert lt == L or lt % 128 == 0, lt
        tn = N
        L_pad = ((L + lt - 1) // lt) * lt
    else:
        tn = N
        if N * tc * 128 > elems_budget:       # batch tiling for huge N, small L
            tn = max(d for d in range(1, N + 1)
                     if N % d == 0 and d * tc * 128 <= elems_budget)
        lane_budget = max(128, elems_budget // (tn * tc))
        lt, L_pad = _pick_l_tile(L, lane_budget)

    n_l = L_pad // lt
    n_n = N // tn

    if L_pad != L:
        # Zero padding is exact for sum / sum-of-squares (inv_n uses the true
        # count); padded lanes of the output are sliced off below.
        x3w = jnp.pad(x3, ((0, 0), (0, 0), (0, L_pad - L)))
    else:
        x3w = x3

    cp_stats = pltpu.CompilerParams(
        dimension_semantics=("parallel", "arbitrary", "arbitrary"),
        vmem_limit_bytes=vmem_limit)
    cp_norm = pltpu.CompilerParams(
        dimension_semantics=("parallel", "parallel", "parallel"),
        vmem_limit_bytes=vmem_limit)

    # Pass 1: per-channel stats -> fused (scale, shift).
    scale, shift = pl.pallas_call(
        functools.partial(_stats_kernel, inv_n=inv_n),
        out_shape=(jax.ShapeDtypeStruct((C, 1), jnp.float32),
                   jax.ShapeDtypeStruct((C, 1), jnp.float32)),
        grid_spec=pltpu.PrefetchScalarGridSpec(
            num_scalar_prefetch=0,
            grid=(C // tc, n_n, n_l),
            in_specs=[
                pl.BlockSpec((tn, tc, lt), lambda i, n, l: (n, i, l)),
                pl.BlockSpec((tc, 1), lambda i, n, l: (i, 0)),
                pl.BlockSpec((tc, 1), lambda i, n, l: (i, 0)),
            ],
            out_specs=(pl.BlockSpec((tc, 1), lambda i, n, l: (i, 0)),
                       pl.BlockSpec((tc, 1), lambda i, n, l: (i, 0))),
            scratch_shapes=[pltpu.VMEM((tc, 1), jnp.float32),
                            pltpu.VMEM((tc, 1), jnp.float32)],
        ),
        compiler_params=cp_stats,
    )(x3w, gamma2, beta2)

    # Pass 2: lane-dense normalize + ReLU; output aliases x's (N,C,L) buffer.
    out3p = pl.pallas_call(
        _norm_kernel,
        out_shape=jax.ShapeDtypeStruct((N, C, L_pad), x_nchw.dtype),
        grid_spec=pltpu.PrefetchScalarGridSpec(
            num_scalar_prefetch=0,
            grid=(C // tc, n_n, n_l),
            in_specs=[
                pl.BlockSpec((tn, tc, lt), lambda i, n, l: (n, i, l)),
                pl.BlockSpec((tc, 1), lambda i, n, l: (i, 0)),
                pl.BlockSpec((tc, 1), lambda i, n, l: (i, 0)),
            ],
            out_specs=pl.BlockSpec((tn, tc, lt), lambda i, n, l: (n, i, l)),
        ),
        compiler_params=cp_norm,
        input_output_aliases={0: 0},
    )(x3w, scale, shift)

    out3 = out3p[:, :, :L] if L_pad != L else out3p
    return out3.reshape(N, C, H, W)


# ---------------------------------------------------------------------------
# Reference + test
# ---------------------------------------------------------------------------
def reference(x_nchw, gamma, beta):
    # pure-JAX reference: training-mode BatchNorm2d (biased variance) + ReLU
    x = x_nchw.astype(jnp.float32)
    mean = jnp.mean(x, axis=(0, 2, 3), keepdims=True)
    var = jnp.mean((x - mean) ** 2, axis=(0, 2, 3), keepdims=True)
    g = gamma.reshape(1, -1, 1, 1)
    b = beta.reshape(1, -1, 1, 1)
    y = (x - mean) * lax.rsqrt(var + EPS) * g + b
    return jnp.maximum(y, 0.0)


if __name__ == "__main__":
    key = jax.random.PRNGKey(0)
    k_x, k_g, k_b = jax.random.split(key, 3)

    # small shapes consistent with the module: BN has 64 channels
    N, C, H, W = 2, 64, 16, 16
    x = jax.random.normal(k_x, (N, C, H, W), dtype=jnp.float32)
    gamma = 1.0 + 0.1 * jax.random.normal(k_g, (C,), dtype=jnp.float32)
    beta = 0.1 * jax.random.normal(k_b, (C,), dtype=jnp.float32)

    bn_relu = jax.jit(batchnorm_relu, static_argnames=("tc", "l_tile"))

    # Default path (fused single-pass for this small shape).
    ref = reference(x, gamma, beta)
    out = jax.block_until_ready(bn_relu(x, gamma, beta))
    assert out.shape == (N, C, H, W)
    np.testing.assert_allclose(np.asarray(out), np.asarray(ref), rtol=1e-4, atol=1e-4)

    # Force the L-tiled two-pass path (used automatically for large N*H*W).
    out2 = jax.block_until_ready(bn_relu(x, gamma, beta, l_tile=128))
    np.testing.assert_allclose(np.asarray(out2), np.asarray(ref), rtol=1e-4, atol=1e-4)

    # Exercise the padded two-pass fallback (H*W not a multiple of 128).
    xp = jax.random.normal(k_x, (2, 64, 14, 14), dtype=jnp.float32)
    refp = reference(xp, gamma, beta)
    outp = jax.block_until_ready(bn_relu(xp, gamma, beta, l_tile=128))
    np.testing.assert_allclose(np.asarray(outp), np.asarray(refp), rtol=1e-4, atol=1e-4)

    print("KERNEL_OK")
</pallas_src>

<mosaic_0001>
module attributes {stable_mosaic.version = 11 : i64} {
  func.func @_fused_kernel(%arg0: i32, %arg1: memref<2x16x256xf32, #tpu.memory_space<vmem>>, %arg2: memref<16x1xf32, #tpu.memory_space<vmem>>, %arg3: memref<16x1xf32, #tpu.memory_space<vmem>>, %arg4: memref<2x16x256xf32, #tpu.memory_space<vmem>>) attributes {dimension_semantics = [#tpu.dimension_semantics<parallel>], iteration_bounds = array<i64: 4>, scalar_prefetch = 0 : i64, scratch_operands = 0 : i64, tpu.core_type = #tpu.core_type<tc>, window_params = [{transform_indices = @transform_0, window_bounds = array<i64: 2, 16, 256>}, {transform_indices = @transform_1, window_bounds = array<i64: 16, 1>}, {transform_indices = @transform_2, window_bounds = array<i64: 16, 1>}, {transform_indices = @transform_3, window_bounds = array<i64: 2, 16, 256>}]} {
    %c0 = arith.constant 0 : index
    %c0_0 = arith.constant 0 : index
    %c0_1 = arith.constant 0 : index
    %0 = vector.load %arg1[%c0, %c0_0, %c0_1] : memref<2x16x256xf32, #tpu.memory_space<vmem>>, vector<2x16x256xf32>
    %cst = arith.constant dense<0.000000e+00> : vector<16x256xf32>
    %1 = vector.multi_reduction <add>, %0, %cst [0] : vector<2x16x256xf32> to vector<16x256xf32>
    %2 = arith.mulf %0, %0 : vector<2x16x256xf32>
    %cst_2 = arith.constant dense<0.000000e+00> : vector<16x256xf32>
    %3 = vector.multi_reduction <add>, %2, %cst_2 [0] : vector<2x16x256xf32> to vector<16x256xf32>
    %cst_3 = arith.constant dense<0.000000e+00> : vector<16xf32>
    %4 = vector.multi_reduction <add>, %1, %cst_3 [1] : vector<16x256xf32> to vector<16xf32>
    %5 = vector.shape_cast %4 : vector<16xf32> to vector<16x1xf32>
    %cst_4 = arith.constant dense<0.000000e+00> : vector<16xf32>
    %6 = vector.multi_reduction <add>, %3, %cst_4 [1] : vector<16x256xf32> to vector<16xf32>
    %7 = vector.shape_cast %6 : vector<16xf32> to vector<16x1xf32>
    %cst_5 = arith.constant 0.001953125 : f32
    %8 = vector.broadcast %cst_5 : f32 to vector<16x1xf32>
    %9 = arith.mulf %5, %8 : vector<16x1xf32>
    %cst_6 = arith.constant 0.001953125 : f32
    %10 = vector.broadcast %cst_6 : f32 to vector<16x1xf32>
    %11 = arith.mulf %7, %10 : vector<16x1xf32>
    %12 = arith.mulf %9, %9 : vector<16x1xf32>
    %13 = arith.subf %11, %12 : vector<16x1xf32>
    %cst_7 = arith.constant 0.000000e+00 : f32
    %14 = vector.broadcast %cst_7 : f32 to vector<16x1xf32>
    %15 = arith.maximumf %13, %14 : vector<16x1xf32>
    %cst_8 = arith.constant 1.000000e-03 : f32
    %16 = vector.broadcast %cst_8 : f32 to vector<16x1xf32>
    %17 = arith.addf %15, %16 : vector<16x1xf32>
    %18 = math.rsqrt %17 : vector<16x1xf32>
    %c0_9 = arith.constant 0 : index
    %c0_10 = arith.constant 0 : index
    %19 = vector.load %arg2[%c0_9, %c0_10] : memref<16x1xf32, #tpu.memory_space<vmem>>, vector<16x1xf32>
    %20 = arith.mulf %18, %19 : vector<16x1xf32>
    %c0_11 = arith.constant 0 : index
    %c0_12 = arith.constant 0 : index
    %21 = vector.load %arg3[%c0_11, %c0_12] : memref<16x1xf32, #tpu.memory_space<vmem>>, vector<16x1xf32>
    %22 = arith.mulf %9, %20 : vector<16x1xf32>
    %23 = arith.subf %21, %22 : vector<16x1xf32>
    %24 = vector.shape_cast %20 : vector<16x1xf32> to vector<1x16x1xf32>
    %25 = vector.broadcast %24 : vector<1x16x1xf32> to vector<2x16x256xf32>
    %26 = arith.mulf %0, %25 : vector<2x16x256xf32>
    %27 = vector.shape_cast %23 : vector<16x1xf32> to vector<1x16x1xf32>
    %28 = vector.broadcast %27 : vector<1x16x1xf32> to vector<2x16x256xf32>
    %29 = arith.addf %26, %28 : vector<2x16x256xf32>
    %cst_13 = arith.constant 0.000000e+00 : f32
    %30 = vector.broadcast %cst_13 : f32 to vector<2x16x256xf32>
    %31 = arith.maximumf %29, %30 : vector<2x16x256xf32>
    %c0_14 = arith.constant 0 : index
    %c0_15 = arith.constant 0 : index
    %c0_16 = arith.constant 0 : index
    %32 = vector.load %arg4[%c0_14, %c0_15, %c0_16] : memref<2x16x256xf32, #tpu.memory_space<vmem>>, vector<2x16x256xf32>
    tpu.vector_store %arg4[%c0_14, %c0_15, %c0_16], %31 {strides = array<i32>} : memref<2x16x256xf32, #tpu.memory_space<vmem>>, vector<2x16x256xf32>,
    return
  }
  func.func @transform_0(%arg0: i32) -> (i32, i32, i32) {
    %c0_i32 = arith.constant 0 : i32
    %c0_i32_0 = arith.constant 0 : i32
    %c0_i32_1 = arith.constant 0 : i32
    return %c0_i32, %arg0, %c0_i32_0 : i32, i32, i32
  }
  func.func @transform_1(%arg0: i32) -> (i32, i32) {
    %c0_i32 = arith.constant 0 : i32
    %c0_i32_0 = arith.constant 0 : i32
    return %arg0, %c0_i32 : i32, i32
  }
  func.func @transform_2(%arg0: i32) -> (i32, i32) {
    %c0_i32 = arith.constant 0 : i32
    %c0_i32_0 = arith.constant 0 : i32
    return %arg0, %c0_i32 : i32, i32
  }
  func.func @transform_3(%arg0: i32) -> (i32, i32, i32) {
    %c0_i32 = arith.constant 0 : i32
    %c0_i32_0 = arith.constant 0 : i32
    %c0_i32_1 = arith.constant 0 : i32
    return %c0_i32, %arg0, %c0_i32_0 : i32, i32, i32
  }
}

</mosaic_0001>

<llo_original>
// kernel: batchnorm_relu.1
$region0: #{batchnorm_relu.1}
  #allocation0 [shape = 'u32[]', space=smem, size = 0x4, offset = 0x4, fixed_abs, tag = 'smem constant byte address 0x4 - core index']
  #allocation1 [shape = 'u32[72,128]{1,0:T(1,128)}', space=vmem, size = 0x9000, scoped, tag = 'internal scratch']
  %s0 = inlined_call_operand.vmem [shape: f32[2,64,256], index: 0, kind: input, shape index: {}]
  %s1 = inlined_call_operand.vmem [shape: f32[64,1], index: 1, kind: input, shape index: {}]
  %s2 = inlined_call_operand.vmem [shape: f32[64,1], index: 2, kind: input, shape index: {}]
  %s3 = inlined_call_operand.vmem [shape: f32[2,64,256], index: 3, kind: output, shape index: {}]
  %s4 = sld [smem:[#allocation0]]
  $region87: #{batchnorm_relu.1} parent=0
    _
  %s6 = ssub.s32 1, %s4
  %s7 = scalar_select 0, %s6, %s4
  $region1: #{batchnorm_relu.1} parent=0
    #allocation2 [shape = 'u8[65536]{0}', space=vmem, size = 0x10000, scoped, tag = 'input window, operand 0']
    #allocation3 [shape = 'u8[65536]{0}', space=vmem, size = 0x10000, scoped, tag = 'output window, operand 0']
    loop: start=0, step=1, limit=6
    $region2: #{batchnorm_relu.1} parent=1 // loop_pre_header
      _
    $region3: #{batchnorm_relu.1} parent=1 // loop_header
      %s9 = sphi 0, %s13
      %p10 = scmp.ge.s32.totalorder %s9, 6
      %s19 = sphi 0, %s21
      %s22 = sphi 0, %s19
      %s23 = sphi 0, %s22
      %s39 = sphi 0, %s23
      %s45 = sphi 0, %s47
      %s48 = sphi 0, %s45
      %s49 = sphi 0, %s48
      %s65 = sphi 0, %s49
      %s71 = sphi 0, %s73
      %s74 = sphi 0, %s71
      %s75 = sphi 0, %s74
      %s91 = sphi 0, %s75
      %s97 = sphi 0, %s99
      %s100 = sphi 0, %s97
      %s101 = sphi 0, %s100
      %s117 = sphi 0, %s101
    $region4: #{batchnorm_relu.1} parent=1 // loop_header_branch
      %12 = sbr.rel (%p10) target = $region8
    $region5: #{batchnorm_relu.1} parent=1 // loop_body
      %s14 = ssub.s32 %s9, 1
      %s15 = ssub.s32 %s9, 2
      %s16 = sadd.s32 %s9, 1
      %s17 = ssub.s32 %s9, %s16
      %p18 = scmp.eq.s32.totalorder %s17, 0
      %s20 = sadd.s32 %s19, 1
      %s21 = scalar_select %p18, %s19, %s20
      %p24 = pneg %p18
      %p25 = scmp.eq.s32.totalorder %s9, 3
      %p26 = por %p24, %p25
      %p27 = scmp.ne.s32.totalorder %s19, %s22
      %p28 = scmp.eq.s32.totalorder %s9, 0
      %p29 = por %p27, %p28
      %p30 = scmp.ne.s32.totalorder %s19, %s22
      %p31 = scmp.eq.s32.totalorder %s14, 3
      %p32 = por %p30, %p31
      %p33 = scmp.ne.s32.totalorder %s22, %s23
      %p34 = scmp.eq.s32.totalorder %s14, 0
      %p35 = por %p33, %p34
      %p36 = scmp.ne.s32.totalorder %s22, %s23
      %p37 = scmp.eq.s32.totalorder %s15, 3
      %p38 = por %p36, %p37
      %p40 = scmp.ne.s32.totalorder %s23, %s39
      %p41 = scmp.eq.s32.totalorder %s15, 0
      %p42 = por %p40, %p41
      %s43 = ssub.s32 %s9, %s16
      %p44 = scmp.eq.s32.totalorder %s43, 0
      %s46 = sadd.s32 %s45, 1
      %s47 = scalar_select %p44, %s45, %s46
      %p50 = pneg %p44
      %p51 = scmp.eq.s32.totalorder %s9, 3
      %p52 = por %p50, %p51
      %p53 = scmp.ne.s32.totalorder %s45, %s48
      %p54 = scmp.eq.s32.totalorder %s9, 0
      %p55 = por %p53, %p54
      %p56 = scmp.ne.s32.totalorder %s45, %s48
      %p57 = scmp.eq.s32.totalorder %s14, 3
      %p58 = por %p56, %p57
      %p59 = scmp.ne.s32.totalorder %s48, %s49
      %p60 = scmp.eq.s32.totalorder %s14, 0
      %p61 = por %p59, %p60
      %p62 = scmp.ne.s32.totalorder %s48, %s49
      %p63 = scmp.eq.s32.totalorder %s15, 3
      %p64 = por %p62, %p63
      %p66 = scmp.ne.s32.totalorder %s49, %s65
      %p67 = scmp.eq.s32.totalorder %s15, 0
      %p68 = por %p66, %p67
      %s69 = ssub.s32 %s9, %s16
      %p70 = scmp.eq.s32.totalorder %s69, 0
      %s72 = sadd.s32 %s71, 1
      %s73 = scalar_select %p70, %s71, %s72
      %p76 = pneg %p70
      %p77 = scmp.eq.s32.totalorder %s9, 3
      %p78 = por %p76, %p77
      %p79 = scmp.ne.s32.totalorder %s71, %s74
      %p80 = scmp.eq.s32.totalorder %s9, 0
      %p81 = por %p79, %p80
      %p82 = scmp.ne.s32.totalorder %s71, %s74
      %p83 = scmp.eq.s32.totalorder %s14, 3
      %p84 = por %p82, %p83
      %p85 = scmp.ne.s32.totalorder %s74, %s75
      %p86 = scmp.eq.s32.totalorder %s14, 0
      %p87 = por %p85, %p86
      %p88 = scmp.ne.s32.totalorder %s74, %s75
      %p89 = scmp.eq.s32.totalorder %s15, 3
      %p90 = por %p88, %p89
      %p92 = scmp.ne.s32.totalorder %s75, %s91
      %p93 = scmp.eq.s32.totalorder %s15, 0
      %p94 = por %p92, %p93
      %s95 = ssub.s32 %s9, %s16
      %p96 = scmp.eq.s32.totalorder %s95, 0
      %s98 = sadd.s32 %s97, 1
      %s99 = scalar_select %p96, %s97, %s98
      %p102 = pneg %p96
      %p103 = scmp.eq.s32.totalorder %s9, 3
      %p104 = por %p102, %p103
      %p105 = scmp.ne.s32.totalorder %s97, %s100
      %p106 = scmp.eq.s32.totalorder %s9, 0
      %p107 = por %p105, %p106
      %p108 = scmp.ne.s32.totalorder %s97, %s100
      %p109 = scmp.eq.s32.totalorder %s14, 3
      %p110 = por %p108, %p109
      %p111 = scmp.ne.s32.totalorder %s100, %s101
      %p112 = scmp.eq.s32.totalorder %s14, 0
      %p113 = por %p111, %p112
      %p114 = scmp.ne.s32.totalorder %s100, %s101
      %p115 = scmp.eq.s32.totalorder %s15, 3
      %p116 = por %p114, %p115
      %p118 = scmp.ne.s32.totalorder %s101, %s117
      %p119 = scmp.eq.s32.totalorder %s15, 0
      %p120 = por %p118, %p119
      %p121 = scmp.le.s32.totalorder 1, %s9
      %p122 = scmp.lt.s32.totalorder %s9, 5
      %p123 = pnand %p121, %p122
      %p124 = pneg %p123
      // Predicated region
      $region9: #{batchnorm_relu.1} parent=5 // pred_check
        _
      $region10: #{batchnorm_relu.1} parent=5 // pred_check_branch
        %126 = sbr.rel (%p123) target = $region12
      $region11: #{batchnorm_relu.1} parent=5 // pred_region
        %s127 = ssub.s32 %s9, 1
      $region12: #{batchnorm_relu.1} parent=5 // pred_fallthru
        _
      %p128 = scmp.lt.s32.totalorder %s9, 4
      // Predicated region
      $region13: #{batchnorm_relu.1} parent=5 // pred_check
        %p129 = pneg %p128
      $region14: #{batchnorm_relu.1} parent=5 // pred_check_branch
        %131 = sbr.rel (%p129) target = $region16
      $region15: #{batchnorm_relu.1} parent=5 // pred_region
        // Predicated region
        $region17: #{batchnorm_relu.1} parent=15 // pred_check
          %p132 = pneg %p29
        $region18: #{batchnorm_relu.1} parent=15 // pred_check_branch
          %134 = sbr.rel (%p132) target = $region20
        $region19: #{batchnorm_relu.1} parent=15 // pred_region
          %s135 = sand.u32 %s19, 1
          %s136 = sand.u32 %s19, 1
          %s137 = smul.addr %s136, 64
          %s138 = scalar_lea.vmem [#allocation2], %s137
          %s139 = smul.u32 2, %s9
          %s140 = smul.addr %s139, 2
          %s141 = smul.addr %s140, 8
          %s142 = scalar_lea.vmem %s0, %s141
          // Predicated region
          $region21: #{batchnorm_relu.1} parent=19 // pred_check
            _
          $region22: #{batchnorm_relu.1} parent=19 // pred_check_branch
            %144 = sbr.rel (0) target = $region24
          $region23: #{batchnorm_relu.1} parent=19 // pred_region
            // Predicated region
            $region25: #{batchnorm_relu.1} parent=23 // pred_check
              _
            $region26: #{batchnorm_relu.1} parent=23 // pred_check_branch
              %146 = sbr.rel (0) target = $region28
            $region27: #{batchnorm_relu.1} parent=23 // pred_region
              loop: start=0, step=1, limit=1
              $region29: #{batchnorm_relu.1} parent=27 // loop_pre_header
                _
              $region30: #{batchnorm_relu.1} parent=27 // loop_header
                %s148 = sphi 0, %s152
                %p149 = scmp.ge.s32.totalorder %s148, 1
                %s153 = sphi %s142, %s142
                %s154 = sphi %s138, %s138
              $region31: #{batchnorm_relu.1} parent=27 // loop_header_branch
                %151 = sbr.rel (%p149) target = $region35
              $region32: #{batchnorm_relu.1} parent=27 // loop_body
                %v155 = vld [vmem:[%s153] sm:$0xff]
                %156 = vst [vmem:[%s154] sm:$0xff] %v155
                %v157 = vld [vmem:[%s153 + $0x8] sm:$0xff]
                %158 = vst [vmem:[%s154 + $0x8] sm:$0xff] %v157
                %v159 = vld [vmem:[%s153 + $0x10] sm:$0xff]
                %160 = vst [vmem:[%s154 + $0x10] sm:$0xff] %v159
                %v161 = vld [vmem:[%s153 + $0x18] sm:$0xff]
                %162 = vst [vmem:[%s154 + $0x18] sm:$0xff] %v161
                %v163 = vld [vmem:[%s153 + $0x80] sm:$0xff]
                %164 = vst [vmem:[%s154 + $0x20] sm:$0xff] %v163
                %v165 = vld [vmem:[%s153 + $0x88] sm:$0xff]
                %166 = vst [vmem:[%s154 + $0x28] sm:$0xff] %v165
                %v167 = vld [vmem:[%s153 + $0x90] sm:$0xff]
                %168 = vst [vmem:[%s154 + $0x30] sm:$0xff] %v167
                %v169 = vld [vmem:[%s153 + $0x98] sm:$0xff]
                %170 = vst [vmem:[%s154 + $0x38] sm:$0xff] %v169
              $region33: #{batchnorm_relu.1} parent=27 // loop_footer
                %s152 = sadd.s32 1, %s148
              $region34: #{batchnorm_relu.1} parent=27 // loop_footer_branch
                %147 = sbr.rel target = $region30
              $region35: #{batchnorm_relu.1} parent=27 // loop_exit
                _
            $region28: #{batchnorm_relu.1} parent=23 // pred_fallthru
              _
            // Predicated region
            $region36: #{batchnorm_relu.1} parent=23 // pred_check
              _
            $region37: #{batchnorm_relu.1} parent=23 // pred_check_branch
              %172 = sbr.rel target = $region39
            $region38: #{batchnorm_relu.1} parent=23 // pred_region
              _
            $region39: #{batchnorm_relu.1} parent=23 // pred_fallthru
              _
          $region24: #{batchnorm_relu.1} parent=19 // pred_fallthru
            _
          %173 = vnop
        $region20: #{batchnorm_relu.1} parent=15 // pred_fallthru
          _
        // Predicated region
        $region40: #{batchnorm_relu.1} parent=15 // pred_check
          %p174 = pneg %p55
        $region41: #{batchnorm_relu.1} parent=15 // pred_check_branch
          %176 = sbr.rel (%p174) target = $region43
        $region42: #{batchnorm_relu.1} parent=15 // pred_region
          %s177 = smul.u32 2, %s9
          %p178 = scmp.lt.s32.totalorder %s177, 7
          %s179 = scalar_select %p178, %s177, 7
          %s180 = smul.addr %s179, 8
          %s181 = scalar_lea.vmem %s1, %s180
          %s182 = smul.u32 2, %s9
        $region43: #{batchnorm_relu.1} parent=15 // pred_fallthru
          _
        // Predicated region
        $region44: #{batchnorm_relu.1} parent=15 // pred_check
          %p183 = pneg %p81
        $region45: #{batchnorm_relu.1} parent=15 // pred_check_branch
          %185 = sbr.rel (%p183) target = $region47
        $region46: #{batchnorm_relu.1} parent=15 // pred_region
          %s186 = smul.u32 2, %s9
          %p187 = scmp.lt.s32.totalorder %s186, 7
          %s188 = scalar_select %p187, %s186, 7
          %s189 = smul.addr %s188, 8
          %s190 = scalar_lea.vmem %s2, %s189
          %s191 = smul.u32 2, %s9
        $region47: #{batchnorm_relu.1} parent=15 // pred_fallthru
          _
      $region16: #{batchnorm_relu.1} parent=5 // pred_fallthru
        _
      %p192 = scmp.le.s32.totalorder 1, %s9
      %p193 = scmp.lt.s32.totalorder %s9, 5
      %p194 = pnand %p192, %p193
      %p195 = pneg %p194
      // Predicated region
      $region48: #{batchnorm_relu.1} parent=5 // pred_check
        _
      $region49: #{batchnorm_relu.1} parent=5 // pred_check_branch
        %197 = sbr.rel (%p194) target = $region51
      $region50: #{batchnorm_relu.1} parent=5 // pred_region
        %s198 = ssub.s32 %s9, 1
        %s199 = sand.u32 %s22, 1
        %s200 = sand.u32 %s22, 1
        %s201 = smul.addr %s200, 64
        %s202 = scalar_lea.vmem [#allocation2], %s201
        // Predicated region
        $region52: #{batchnorm_relu.1} parent=50 // pred_check
          %p203 = pneg %p35
        $region53: #{batchnorm_relu.1} parent=50 // pred_check_branch
          %205 = sbr.rel (%p203) target = $region55
        $region54: #{batchnorm_relu.1} parent=50 // pred_region
          _
        $region55: #{batchnorm_relu.1} parent=50 // pred_fallthru
          _
        %s206 = sand.u32 %s22, 1
        %s207 = sand.u32 %s22, 1
        %s208 = smul.addr %s207, 64
        %s209 = scalar_lea.vmem [#allocation2], %s208
        %p210 = pneg %p35
        %p211 = pneg %p32
        %s212 = smul.u32 2, %s14
        %p213 = scmp.lt.s32.totalorder %s212, 7
        %s214 = scalar_select %p213, %s212, 7
        %s215 = smul.addr %s214, 8
        %s216 = scalar_lea.vmem %s1, %s215
        %p217 = pneg %p61
        %p218 = pneg %p58
        %s219 = smul.u32 2, %s14
        %p220 = scmp.lt.s32.totalorder %s219, 7
        %s221 = scalar_select %p220, %s219, 7
        %s222 = smul.addr %s221, 8
        %s223 = scalar_lea.vmem %s2, %s222
        %p224 = pneg %p87
        %p225 = pneg %p84
        %p226 = pneg %p113
        %p227 = pneg %p110
        %s228 = sand.u32 %s100, 1
        %s229 = sand.u32 %s100, 1
        %s230 = smul.addr %s229, 64
        %s231 = scalar_lea.vmem [#allocation3], %s230
        %s232 = smul.u32 2, %s14
        %s233 = smul.u32 2, %s14
        %p234 = scmp.lt.s32.totalorder %s233, 7
        %s235 = scalar_select %p234, %s233, 7
        %s236 = smul.addr %s235, 8
        %s237 = scalar_lea.vmem %s1, %s236
        %s238 = smul.u32 2, %s14
        %s239 = smul.u32 2, %s14
        %p240 = scmp.lt.s32.totalorder %s239, 7
        %s241 = scalar_select %p240, %s239, 7
        %s242 = smul.addr %s241, 8
        %s243 = scalar_lea.vmem %s2, %s242
        %s244 = smul.u32 2, %s14
        %s245 = smul.u32 2, %s14
        %v246 = vld [vmem:[%s202] sm:$0xff]
        %v247 = vld [vmem:[%s202 + $0x8] sm:$0xff]
        %v248 = vld [vmem:[%s202 + $0x10] sm:$0xff]
        %v249 = vld [vmem:[%s202 + $0x18] sm:$0xff]
        %v250 = vld [vmem:[%s202 + $0x20] sm:$0xff]
        %v251 = vld [vmem:[%s202 + $0x28] sm:$0xff]
        %v252 = vld [vmem:[%s202 + $0x30] sm:$0xff]
        %v253 = vld [vmem:[%s202 + $0x38] sm:$0xff]
        %v254 = vadd.f32 %v246, %v250
        %v255 = vadd.f32 %v247, %v251
        %v256 = vadd.f32 %v248, %v252
        %v257 = vadd.f32 %v249, %v253
        %v258 = vmul.f32 %v246, %v246
        %v259 = vmul.f32 %v247, %v247
        %v260 = vmul.f32 %v248, %v248
        %v261 = vmul.f32 %v249, %v249
        %v262 = vmul.f32 %v250, %v250
        %v263 = vmul.f32 %v251, %v251
        %v264 = vmul.f32 %v252, %v252
        %v265 = vmul.f32 %v253, %v253
        %v266 = vadd.f32 %v258, %v262
        %v267 = vadd.f32 %v259, %v263
        %v268 = vadd.f32 %v260, %v264
        %v269 = vadd.f32 %v261, %v265
        %v270 = vadd.f32 %v254, %v255
        %271 = vadd.xlane.f32.xlu0 %v270
        %v272 = vpop.xlane.xlu0 %271
        %v273 = vadd.f32 %v256, %v257
        %274 = vadd.xlane.f32.xlu0 %v273
        %v275 = vpop.xlane.xlu0 %274
        %v276 = vadd.f32 %v266, %v267
        %277 = vadd.xlane.f32.xlu0 %v276
        %v278 = vpop.xlane.xlu0 %277
        %v279 = vadd.f32 %v268, %v269
        %280 = vadd.xlane.f32.xlu0 %v279
        %v281 = vpop.xlane.xlu0 %280
        %v282 = vmul.f32 %v272, 0.001953125
        %v283 = vmul.f32 %v275, 0.001953125
        %v284 = vmul.f32 %v278, 0.001953125
        %v285 = vmul.f32 %v281, 0.001953125
        %v286 = vmul.f32 %v282, %v282
        %v287 = vmul.f32 %v283, %v283
        %v288 = vsub.f32 %v284, %v286
        %v289 = vsub.f32 %v285, %v287
        %v290 = vmax.f32 %v288, 0.0
        %v291 = vmax.f32 %v289, 0.0
        %v292 = vadd.f32 %v290, 0.001
        %v293 = vadd.f32 %v291, 0.001
        %v294 = vrsqrt.pop %v292
        %v295 = vmul.f32 %v294, %v292
        %v296 = vmul.f32 %v295, %v294
        %v297 = vmul.f32 0.5, %v296
        %v298 = vsub.f32 1.5, %v297
        %v299 = vmul.f32 %v294, %v298
        %vm300 = vweird.f32 %v292
        %vm301 = vweird.f32 %v294
        %vm302 = vmor %vm300, %vm301
        %v303 = vsel %vm302, %v294, %v299
        %v304 = vrsqrt.pop %v293
        %v305 = vmul.f32 %v304, %v293
        %v306 = vmul.f32 %v305, %v304
        %v307 = vmul.f32 0.5, %v306
        %v308 = vsub.f32 1.5, %v307
        %v309 = vmul.f32 %v304, %v308
        %vm310 = vweird.f32 %v293
        %vm311 = vweird.f32 %v304
        %vm312 = vmor %vm310, %vm311
        %v313 = vsel %vm312, %v304, %v309
        %v314 = vld [vmem:[%s237] sm:$0xff]
        %v315 = vld [vmem:[%s237 + $0x8] sm:$0xff]
        %v316 = vmul.f32 %v303, %v314
        %v317 = vmul.f32 %v313, %v315
        %v318 = vld [vmem:[%s243] sm:$0xff]
        %v319 = vld [vmem:[%s243 + $0x8] sm:$0xff]
        %v320 = vmul.f32 %v282, %v316
        %v321 = vmul.f32 %v283, %v317
        %v322 = vsub.f32 %v318, %v320
        %v323 = vsub.f32 %v319, %v321
        %325 = vset.pattern.permute.xlu0 0
        %326 = vperm.xlu0 %325, %v316
        %v327 = vpop.permute.xlu0 %326
        %330 = vset.pattern.permute.xlu0 0
        %331 = vperm.xlu0 %330, %v317
        %v332 = vpop.permute.xlu0 %331
        %v334 = vmul.f32 %v246, %v327
        %v335 = vmul.f32 %v247, %v327
        %v336 = vmul.f32 %v248, %v332
        %v337 = vmul.f32 %v249, %v332
        %v338 = vmul.f32 %v250, %v327
        %v339 = vmul.f32 %v251, %v327
        %v340 = vmul.f32 %v252, %v332
        %v341 = vmul.f32 %v253, %v332
        %343 = vset.pattern.permute.xlu0 0
        %344 = vperm.xlu0 %343, %v322
        %v345 = vpop.permute.xlu0 %344
        %348 = vset.pattern.permute.xlu0 0
        %349 = vperm.xlu0 %348, %v323
        %v350 = vpop.permute.xlu0 %349
        %v352 = vadd.f32 %v334, %v345
        %v353 = vadd.f32 %v335, %v345
        %v354 = vadd.f32 %v336, %v350
        %v355 = vadd.f32 %v337, %v350
        %v356 = vadd.f32 %v338, %v345
        %v357 = vadd.f32 %v339, %v345
        %v358 = vadd.f32 %v340, %v350
        %v359 = vadd.f32 %v341, %v350
        %v360 = vmax.f32 %v352, 0.0
        %v361 = vmax.f32 %v353, 0.0
        %v362 = vmax.f32 %v354, 0.0
        %v363 = vmax.f32 %v355, 0.0
        %v364 = vmax.f32 %v356, 0.0
        %v365 = vmax.f32 %v357, 0.0
        %v366 = vmax.f32 %v358, 0.0
        %v367 = vmax.f32 %v359, 0.0
        %368 = vst [vmem:[%s231] sm:$0xff] %v360
        %369 = vst [vmem:[%s231 + $0x8] sm:$0xff] %v361
        %370 = vst [vmem:[%s231 + $0x10] sm:$0xff] %v362
        %371 = vst [vmem:[%s231 + $0x18] sm:$0xff] %v363
        %372 = vst [vmem:[%s231 + $0x20] sm:$0xff] %v364
        %373 = vst [vmem:[%s231 + $0x28] sm:$0xff] %v365
        %374 = vst [vmem:[%s231 + $0x30] sm:$0xff] %v366
        %375 = vst [vmem:[%s231 + $0x38] sm:$0xff] %v367
        %s376 = sand.u32 %s100, 1
        %s377 = sand.u32 %s100, 1
        %s378 = smul.addr %s377, 64
        %s379 = scalar_lea.vmem [#allocation3], %s378
        // Predicated region
        $region56: #{batchnorm_relu.1} parent=50 // pred_check
          %p380 = pneg %p110
        $region57: #{batchnorm_relu.1} parent=50 // pred_check_branch
          %382 = sbr.rel (%p380) target = $region59
        $region58: #{batchnorm_relu.1} parent=50 // pred_region
          %s383 = smul.u32 2, %s14
          %s384 = smul.addr %s383, 2
          %s385 = smul.addr %s384, 8
          %s386 = scalar_lea.vmem %s3, %s385
          // Predicated region
          $region60: #{batchnorm_relu.1} parent=58 // pred_check
            _
          $region61: #{batchnorm_relu.1} parent=58 // pred_check_branch
            %388 = sbr.rel (0) target = $region63
          $region62: #{batchnorm_relu.1} parent=58 // pred_region
            // Predicated region
            $region64: #{batchnorm_relu.1} parent=62 // pred_check
              _
            $region65: #{batchnorm_relu.1} parent=62 // pred_check_branch
              %390 = sbr.rel (0) target = $region67
            $region66: #{batchnorm_relu.1} parent=62 // pred_region
              loop: start=0, step=1, limit=1
              $region68: #{batchnorm_relu.1} parent=66 // loop_pre_header
                _
              $region69: #{batchnorm_relu.1} parent=66 // loop_header
                %s392 = sphi 0, %s396
                %p393 = scmp.ge.s32.totalorder %s392, 1
                %s397 = sphi %s379, %s379
                %s398 = sphi %s386, %s386
              $region70: #{batchnorm_relu.1} parent=66 // loop_header_branch
                %395 = sbr.rel (%p393) target = $region74
              $region71: #{batchnorm_relu.1} parent=66 // loop_body
                %v399 = vld [vmem:[%s397] sm:$0xff]
                %400 = vst [vmem:[%s398] sm:$0xff] %v399
                %v401 = vld [vmem:[%s397 + $0x8] sm:$0xff]
                %402 = vst [vmem:[%s398 + $0x8] sm:$0xff] %v401
                %v403 = vld [vmem:[%s397 + $0x10] sm:$0xff]
                %404 = vst [vmem:[%s398 + $0x10] sm:$0xff] %v403
                %v405 = vld [vmem:[%s397 + $0x18] sm:$0xff]
                %406 = vst [vmem:[%s398 + $0x18] sm:$0xff] %v405
                %v407 = vld [vmem:[%s397 + $0x20] sm:$0xff]
                %408 = vst [vmem:[%s398 + $0x80] sm:$0xff] %v407
                %v409 = vld [vmem:[%s397 + $0x28] sm:$0xff]
                %410 = vst [vmem:[%s398 + $0x88] sm:$0xff] %v409
                %v411 = vld [vmem:[%s397 + $0x30] sm:$0xff]
                %412 = vst [vmem:[%s398 + $0x90] sm:$0xff] %v411
                %v413 = vld [vmem:[%s397 + $0x38] sm:$0xff]
                %414 = vst [vmem:[%s398 + $0x98] sm:$0xff] %v413
              $region72: #{batchnorm_relu.1} parent=66 // loop_footer
                %s396 = sadd.s32 1, %s392
              $region73: #{batchnorm_relu.1} parent=66 // loop_footer_branch
                %391 = sbr.rel target = $region69
              $region74: #{batchnorm_relu.1} parent=66 // loop_exit
                _
            $region67: #{batchnorm_relu.1} parent=62 // pred_fallthru
              _
            // Predicated region
            $region75: #{batchnorm_relu.1} parent=62 // pred_check
              _
            $region76: #{batchnorm_relu.1} parent=62 // pred_check_branch
              %416 = sbr.rel target = $region78
            $region77: #{batchnorm_relu.1} parent=62 // pred_region
              _
            $region78: #{batchnorm_relu.1} parent=62 // pred_fallthru
              _
          $region63: #{batchnorm_relu.1} parent=58 // pred_fallthru
            _
          %417 = vnop
        $region59: #{batchnorm_relu.1} parent=50 // pred_fallthru
          _
      $region51: #{batchnorm_relu.1} parent=5 // pred_fallthru
        _
      %p418 = scmp.le.s32.totalorder 2, %s9
      // Predicated region
      $region79: #{batchnorm_relu.1} parent=5 // pred_check
        %p419 = pneg %p418
      $region80: #{batchnorm_relu.1} parent=5 // pred_check_branch
        %421 = sbr.rel (%p419) target = $region82
      $region81: #{batchnorm_relu.1} parent=5 // pred_region
        %s422 = ssub.s32 %s9, 2
        // Predicated region
        $region83: #{batchnorm_relu.1} parent=81 // pred_check
          %p423 = pneg %p116
        $region84: #{batchnorm_relu.1} parent=81 // pred_check_branch
          %425 = sbr.rel (%p423) target = $region86
        $region85: #{batchnorm_relu.1} parent=81 // pred_region
          %s426 = sand.u32 %s101, 1
          %s427 = sand.u32 %s101, 1
          %s428 = smul.addr %s427, 64
          %s429 = scalar_lea.vmem [#allocation3], %s428
        $region86: #{batchnorm_relu.1} parent=81 // pred_fallthru
          _
      $region82: #{batchnorm_relu.1} parent=5 // pred_fallthru
        _
    $region6: #{batchnorm_relu.1} parent=1 // loop_footer
      %s13 = sadd.s32 1, %s9
    $region7: #{batchnorm_relu.1} parent=1 // loop_footer_branch
      %8 = sbr.rel target = $region3
    $region8: #{batchnorm_relu.1} parent=1 // loop_exit
      _

</llo_original>
